<compile_context>
chip_gen: v6e
topology: v6e:2x2x1
jax: 0.10.0
libtpu: 0.0.40
codegen_flags: <defaults>
</compile_context>

<pallas_src>
import jax
import jax.numpy as jnp
from jax.experimental import pallas as pl
from jax.experimental.pallas import tpu as pltpu

_MIB = 1024 * 1024


# ----------------------------------------------------------------------------
# Kernels
# ----------------------------------------------------------------------------
def _remove_kernel_resident(x_ref, w_ref, b_ref, o_ref):
    """Small-D path: full (D, D) weight resident in VMEM.

    x_ref: (TB, D)   w_ref: (D, D) (pre-transposed: y = x @ w + b)
    b_ref: (1, D)    o_ref: (TB, D)
    """
    x = x_ref[...]
    y = jnp.dot(x, w_ref[...], preferred_element_type=jnp.float32) + b_ref[...]
    # out = x - y * (<x, y> / <y, y>)  ==  x - (y/||y||) * <x, y/||y||>
    xy = jnp.sum(x * y, axis=-1, keepdims=True)      # (TB, 1)
    yy = jnp.sum(y * y, axis=-1, keepdims=True)      # (TB, 1)
    # Exact reciprocal (EUP slot); no eps guard — matches PyTorch (NaN/Inf when
    # ||x @ W + b|| == 0).
    scale = xy * pl.reciprocal(yy)                   # (TB, 1)
    o_ref[...] = (x - y * scale).astype(o_ref.dtype)


def _remove_kernel_ktiled(xk_ref, w_ref, b_ref, x_ref, o_ref, y_sc):
    """Large-D path: weight streamed as (TK, D) slabs along a K grid axis.

    xk_ref: (TB, TK)  K-slice of x            (streams with k)
    w_ref : (TK, D)   K-slab of the weight    (streams with k, double-buffered)
    b_ref : (1, D)    bias                    (resident, single-buffered)
    x_ref : (TB, D)   full x                  (resident across the K loop)
    o_ref : (TB, D)   output                  (written on the last K step only)
    y_sc  : (TB, D)   f32 accumulator for y = x @ W (+ b added in the epilogue)
    """
    k = pl.program_id(2)

    @pl.when(k == 0)
    def _():
        y_sc[...] = jnp.zeros_like(y_sc)

    y_sc[...] += jnp.dot(xk_ref[...], w_ref[...],
                         preferred_element_type=jnp.float32)

    @pl.when(k == pl.num_programs(2) - 1)
    def _():
        x = x_ref[...]
        y = y_sc[...] + b_ref[...]
        xy = jnp.sum(x * y, axis=-1, keepdims=True)
        yy = jnp.sum(y * y, axis=-1, keepdims=True)
        scale = xy * pl.reciprocal(yy)
        o_ref[...] = (x - y * scale).astype(o_ref.dtype)


# ----------------------------------------------------------------------------
# Wrapper
# ----------------------------------------------------------------------------
def remove_forward(src_sen_emb, tgt_sen_emb, params, *, batch_tile=None,
                   k_tile=None):
    """src/tgt: (B, 1, D).  params: {'w': (2, D, D) pre-transposed, 'b': (2, 1, D)}."""
    B, S, D = src_sen_emb.shape
    assert S == 1, "PyTorch module only type-checks for sequence length 1"
    assert tgt_sen_emb.shape == (B, S, D)
    w = params["w"]
    b = params["b"]
    assert w.shape == (2, D, D) and b.shape == (2, 1, D)

    # Fuse the two streams into one (2, B, D) slab; stream is the LEADING grid
    # axis so v7x's two TensorCores split by stream (weight read once per core).
    x = jnp.stack([src_sen_emb.reshape(B, D), tgt_sen_emb.reshape(B, D)], axis=0)

    x_by = jnp.dtype(x.dtype).itemsize
    w_by = jnp.dtype(w.dtype).itemsize
    o_by = x_by

    # Path selection: keep the whole (D, D) weight resident while it is small
    # (<= 16 MiB); otherwise stream (TK, D) slabs over a K grid axis.
    if k_tile is None and D * D * w_by > 16 * _MIB:
        for cand in (512, 256, 128):
            if D % cand == 0:
                k_tile = cand
                break
    use_tiled = k_tile is not None
    if use_tiled:
        assert D % k_tile == 0 and k_tile % 128 == 0, "k_tile must be a 128-multiple dividing D"

    if batch_tile is None:
        batch_tile = 256 if use_tiled else 512
    tb = B if B <= batch_tile else batch_tile          # full-B block is always legal
    n_bt = pl.cdiv(B, tb)                              # ragged B -> partial last tile

    # Advisory cost estimate so XLA overlaps neighbours with the weight DMA.
    cost = pl.CostEstimate(
        flops=int(2 * 2 * B * D * D + 8 * B * D),
        transcendentals=int(2 * B),
        bytes_accessed=int((2 * B * D) * x_by * (2 if use_tiled else 1)
                           + (2 * B * D) * o_by
                           + (2 * D * D + 2 * D) * w_by),
    )

    def run(single_buffer_const):
        const_kw = (dict(pipeline_mode=pl.Buffered(1))
                    if single_buffer_const else {})

        if not use_tiled:
            vmem_est = (2 * tb * D * x_by                       # x (double buffered)
                        + 2 * tb * D * o_by                     # out
                        + (1 if single_buffer_const else 2) * (D * D + D) * w_by)
            in_specs = [
                pl.BlockSpec((None, tb, D), lambda s, i: (s, i, 0)),            # x
                pl.BlockSpec((None, D, D), lambda s, i: (s, 0, 0), **const_kw),  # w (resident)
                pl.BlockSpec((None, 1, D), lambda s, i: (s, 0, 0), **const_kw),  # b (resident)
            ]
            out_spec = pl.BlockSpec((None, tb, D), lambda s, i: (s, i, 0))
            grid = (2, n_bt)
            sem = ("parallel", "parallel")
            kernel = _remove_kernel_resident
            operands = (x, w, b)
            scratch = []
        else:
            vmem_est = (2 * tb * k_tile * x_by                  # x K-slices
                        + 2 * k_tile * D * w_by                 # weight slabs
                        + (1 if single_buffer_const else 2) * D * w_by  # bias
                        + 2 * tb * D * x_by                     # resident full x
                        + 2 * tb * D * o_by                     # out
                        + tb * D * 4)                           # y accumulator
            in_specs = [
                pl.BlockSpec((None, tb, k_tile), lambda s, i, k: (s, i, k)),     # x K-slab
                pl.BlockSpec((None, k_tile, D), lambda s, i, k: (s, k, 0)),      # w K-slab
                pl.BlockSpec((None, 1, D), lambda s, i, k: (s, 0, 0), **const_kw),  # b
                pl.BlockSpec((None, tb, D), lambda s, i, k: (s, i, 0)),          # full x
            ]
            out_spec = pl.BlockSpec((None, tb, D), lambda s, i, k: (s, i, 0))
            grid = (2, n_bt, D // k_tile)
            sem = ("parallel", "parallel", "arbitrary")
            kernel = _remove_kernel_ktiled
            operands = (x, w, b, x)
            scratch = [pltpu.VMEM((tb, D), jnp.float32)]

        # Explicit scoped-VMEM budget: footprint * headroom, capped by physical VMEM.
        try:
            cap = int(0.85 * pltpu.get_tpu_info().vmem_capacity_bytes)
        except Exception:
            cap = 100 * _MIB
        vmem_limit = int(min(cap, max(32 * _MIB, int(1.25 * vmem_est) + 2 * _MIB)))

        return pl.pallas_call(
            kernel,
            out_shape=jax.ShapeDtypeStruct((2, B, D), x.dtype),
            grid=grid,
            in_specs=in_specs,
            out_specs=out_spec,
            scratch_shapes=scratch,
            compiler_params=pltpu.CompilerParams(
                dimension_semantics=sem,
                vmem_limit_bytes=vmem_limit),
            cost_estimate=cost,
        )(*operands)

    try:
        out = run(True)
    except Exception:
        # Fallback for jax versions without pl.Buffered(1) single-buffering of
        # grid-constant operands; only costs the extra (unused) VMEM buffer.
        out = run(False)

    return out[0].reshape(B, S, D), out[1].reshape(B, S, D)


# ----------------------------------------------------------------------------
# Pure-JAX reference (norm formulation, matches the PyTorch forward)
# ----------------------------------------------------------------------------
def _reference(src, tgt, params):
    def one(x, w, b):
        y = x @ w + b
        n = jnp.linalg.norm(y, axis=-1, keepdims=True)
        e = y / n
        pc = jnp.sum(x * e, axis=-1, keepdims=True)
        return x - e * pc

    B, S, D = src.shape
    s = one(src.reshape(B, D), params["w"][0], params["b"][0]).reshape(B, S, D)
    t = one(tgt.reshape(B, D), params["w"][1], params["b"][1]).reshape(B, S, D)
    return s, t


def _init_params(key, D, dtype=jnp.float32):
    # Mimic nn.Linear init; weights stored pre-transposed (y = x @ W + b) and
    # pre-stacked over the two streams so the fused kernel needs no reshuffling.
    k1, k2, k3, k4 = jax.random.split(key, 4)
    scale = 1.0 / jnp.sqrt(jnp.float32(D))
    src_w = jax.random.uniform(k1, (D, D), dtype, -1.0, 1.0) * scale
    src_b = jax.random.uniform(k2, (1, D), dtype, -1.0, 1.0) * scale
    tgt_w = jax.random.uniform(k3, (D, D), dtype, -1.0, 1.0) * scale
    tgt_b = jax.random.uniform(k4, (1, D), dtype, -1.0, 1.0) * scale
    return {"w": jnp.stack([src_w, tgt_w], axis=0),   # (2, D, D)
            "b": jnp.stack([src_b, tgt_b], axis=0)}   # (2, 1, D)


if __name__ == "__main__":
    key = jax.random.PRNGKey(0)
    kp1, kp2, ks1, kt1, ks2, kt2 = jax.random.split(key, 6)
    S = 1

    # --- Test 1: resident-weight path (B=2, D=32) -----------------------------
    B1, D1 = 2, 32
    params1 = _init_params(kp1, D1)
    src1 = jax.random.normal(ks1, (B1, S, D1), jnp.float32)
    tgt1 = jax.random.normal(kt1, (B1, S, D1), jnp.float32)
    s_out1, t_out1 = remove_forward(src1, tgt1, params1)
    jax.block_until_ready((s_out1, t_out1))
    rs1, rt1 = _reference(src1, tgt1, params1)
    assert jnp.allclose(s_out1, rs1, atol=1e-5, rtol=1e-5)
    assert jnp.allclose(t_out1, rt1, atol=1e-5, rtol=1e-5)

    # --- Test 2: force the K-tiled streamed-weight path + ragged batch --------
    # (B=20 with 8-row tiles -> partial last tile; D=256 with TK=128 -> 2 K steps)
    B2, D2 = 20, 256
    params2 = _init_params(kp2, D2)
    src2 = jax.random.normal(ks2, (B2, S, D2), jnp.float32)
    tgt2 = jax.random.normal(kt2, (B2, S, D2), jnp.float32)
    s_out2, t_out2 = remove_forward(src2, tgt2, params2, batch_tile=8, k_tile=128)
    jax.block_until_ready((s_out2, t_out2))
    rs2, rt2 = _reference(src2, tgt2, params2)
    assert jnp.allclose(s_out2, rs2, atol=1e-4, rtol=1e-4)
    assert jnp.allclose(t_out2, rt2, atol=1e-4, rtol=1e-4)

    print("KERNEL_OK")
</pallas_src>

<mosaic_0001>
module attributes {stable_mosaic.version = 11 : i64} {
  func.func @_remove_kernel_resident(%arg0: i32, %arg1: i32, %arg2: memref<1x2x32xf32, #tpu.memory_space<vmem>>, %arg3: memref<1x32x32xf32, #tpu.memory_space<vmem>>, %arg4: memref<1x1x32xf32, #tpu.memory_space<vmem>>, %arg5: memref<1x2x32xf32, #tpu.memory_space<vmem>>) attributes {dimension_semantics = [#tpu.dimension_semantics<parallel>, #tpu.dimension_semantics<parallel>], iteration_bounds = array<i64: 2, 1>, scalar_prefetch = 0 : i64, scratch_operands = 0 : i64, tpu.core_type = #tpu.core_type<tc>, window_params = [{transform_indices = @transform_0, window_bounds = array<i64: 1, 2, 32>}, {pipeline_mode = #tpu.pipeline_mode<synchronous>, transform_indices = @transform_1, window_bounds = array<i64: 1, 32, 32>}, {pipeline_mode = #tpu.pipeline_mode<synchronous>, transform_indices = @transform_2, window_bounds = array<i64: 1, 1, 32>}, {transform_indices = @transform_3, window_bounds = array<i64: 1, 2, 32>}]} {
    %c0 = arith.constant 0 : index
    %c0_0 = arith.constant 0 : index
    %c0_1 = arith.constant 0 : index
    %0 = vector.load %arg2[%c0, %c0_0, %c0_1] : memref<1x2x32xf32, #tpu.memory_space<vmem>>, vector<1x2x32xf32>
    %1 = vector.shape_cast %0 : vector<1x2x32xf32> to vector<2x32xf32>
    %c0_2 = arith.constant 0 : index
    %c0_3 = arith.constant 0 : index
    %c0_4 = arith.constant 0 : index
    %2 = vector.load %arg3[%c0_2, %c0_3, %c0_4] : memref<1x32x32xf32, #tpu.memory_space<vmem>>, vector<1x32x32xf32>
    %3 = vector.shape_cast %2 : vector<1x32x32xf32> to vector<32x32xf32>
    %cst = arith.constant dense<0.000000e+00> : vector<2x32xf32>
    %4 = tpu.matmul %1, %3, %cst {dimension_numbers = #tpu.dot_dimension_numbers<[1], [0], [0], [1], [0, 0, 1, 1], [], []>} : vector<2x32xf32>, vector<32x32xf32>, vector<2x32xf32> -> vector<2x32xf32>
    %c0_5 = arith.constant 0 : index
    %c0_6 = arith.constant 0 : index
    %c0_7 = arith.constant 0 : index
    %5 = vector.load %arg4[%c0_5, %c0_6, %c0_7] : memref<1x1x32xf32, #tpu.memory_space<vmem>>, vector<1x1x32xf32>
    %6 = vector.shape_cast %5 : vector<1x1x32xf32> to vector<1x32xf32>
    %7 = vector.broadcast %6 : vector<1x32xf32> to vector<2x32xf32>
    %8 = arith.addf %4, %7 : vector<2x32xf32>
    %9 = arith.mulf %1, %8 : vector<2x32xf32>
    %cst_8 = arith.constant dense<0.000000e+00> : vector<2xf32>
    %10 = vector.multi_reduction <add>, %9, %cst_8 [1] : vector<2x32xf32> to vector<2xf32>
    %11 = vector.shape_cast %10 : vector<2xf32> to vector<2x1xf32>
    %12 = arith.mulf %8, %8 : vector<2x32xf32>
    %cst_9 = arith.constant dense<0.000000e+00> : vector<2xf32>
    %13 = vector.multi_reduction <add>, %12, %cst_9 [1] : vector<2x32xf32> to vector<2xf32>
    %14 = vector.shape_cast %13 : vector<2xf32> to vector<2x1xf32>
    %15 = tpu.reciprocal %14 : vector<2x1xf32> -> vector<2x1xf32>
    %16 = arith.mulf %11, %15 : vector<2x1xf32>
    %17 = vector.broadcast %16 : vector<2x1xf32> to vector<2x32xf32>
    %18 = arith.mulf %8, %17 : vector<2x32xf32>
    %19 = arith.subf %1, %18 : vector<2x32xf32>
    %c0_10 = arith.constant 0 : index
    %c0_11 = arith.constant 0 : index
    %c0_12 = arith.constant 0 : index
    %20 = vector.load %arg5[%c0_10, %c0_11, %c0_12] : memref<1x2x32xf32, #tpu.memory_space<vmem>>, vector<1x2x32xf32>
    %21 = vector.shape_cast %20 : vector<1x2x32xf32> to vector<2x32xf32>
    %22 = vector.shape_cast %19 : vector<2x32xf32> to vector<1x2x32xf32>
    tpu.vector_store %arg5[%c0_10, %c0_11, %c0_12], %22 {strides = array<i32>} : memref<1x2x32xf32, #tpu.memory_space<vmem>>, vector<1x2x32xf32>,
    return
  }
  func.func @transform_0(%arg0: i32, %arg1: i32) -> (i32, i32, i32) {
    %c0_i32 = arith.constant 0 : i32
    %c0_i32_0 = arith.constant 0 : i32
    return %arg0, %arg1, %c0_i32 : i32, i32, i32
  }
  func.func @transform_1(%arg0: i32, %arg1: i32) -> (i32, i32, i32) {
    %c0_i32 = arith.constant 0 : i32
    %c0_i32_0 = arith.constant 0 : i32
    %c0_i32_1 = arith.constant 0 : i32
    return %arg0, %c0_i32, %c0_i32_0 : i32, i32, i32
  }
  func.func @transform_2(%arg0: i32, %arg1: i32) -> (i32, i32, i32) {
    %c0_i32 = arith.constant 0 : i32
    %c0_i32_0 = arith.constant 0 : i32
    %c0_i32_1 = arith.constant 0 : i32
    return %arg0, %c0_i32, %c0_i32_0 : i32, i32, i32
  }
  func.func @transform_3(%arg0: i32, %arg1: i32) -> (i32, i32, i32) {
    %c0_i32 = arith.constant 0 : i32
    %c0_i32_0 = arith.constant 0 : i32
    return %arg0, %arg1, %c0_i32 : i32, i32, i32
  }
}

module attributes {stable_mosaic.version = 11 : i64} {
  func.func @_remove_kernel_resident(%arg0: i32, %arg1: i32, %arg2: memref<1x2x32xf32, #tpu.memory_space<vmem>>, %arg3: memref<1x32x32xf32, #tpu.memory_space<vmem>>, %arg4: memref<1x1x32xf32, #tpu.memory_space<vmem>>, %arg5: memref<1x2x32xf32, #tpu.memory_space<vmem>>) attributes {dimension_semantics = [#tpu.dimension_semantics<parallel>, #tpu.dimension_semantics<parallel>], iteration_bounds = array<i64: 2, 1>, scalar_prefetch = 0 : i64, scratch_operands = 0 : i64, tpu.core_type = #tpu.core_type<tc>, window_params = [{transform_indices = @transform_0, window_bounds = array<i64: 1, 2, 32>}, {transform_indices = @transform_1, window_bounds = array<i64: 1, 32, 32>}, {transform_indices = @transform_2, window_bounds = array<i64: 1, 1, 32>}, {transform_indices = @transform_3, window_bounds = array<i64: 1, 2, 32>}]} {
    %c0 = arith.constant 0 : index
    %c0_0 = arith.constant 0 : index
    %c0_1 = arith.constant 0 : index
    %0 = vector.load %arg2[%c0, %c0_0, %c0_1] : memref<1x2x32xf32, #tpu.memory_space<vmem>>, vector<1x2x32xf32>
    %1 = vector.shape_cast %0 : vector<1x2x32xf32> to vector<2x32xf32>
    %c0_2 = arith.constant 0 : index
    %c0_3 = arith.constant 0 : index
    %c0_4 = arith.constant 0 : index
    %2 = vector.load %arg3[%c0_2, %c0_3, %c0_4] : memref<1x32x32xf32, #tpu.memory_space<vmem>>, vector<1x32x32xf32>
    %3 = vector.shape_cast %2 : vector<1x32x32xf32> to vector<32x32xf32>
    %cst = arith.constant dense<0.000000e+00> : vector<2x32xf32>
    %4 = tpu.matmul %1, %3, %cst {dimension_numbers = #tpu.dot_dimension_numbers<[1], [0], [0], [1], [0, 0, 1, 1], [], []>} : vector<2x32xf32>, vector<32x32xf32>, vector<2x32xf32> -> vector<2x32xf32>
    %c0_5 = arith.constant 0 : index
    %c0_6 = arith.constant 0 : index
    %c0_7 = arith.constant 0 : index
    %5 = vector.load %arg4[%c0_5, %c0_6, %c0_7] : memref<1x1x32xf32, #tpu.memory_space<vmem>>, vector<1x1x32xf32>
    %6 = vector.shape_cast %5 : vector<1x1x32xf32> to vector<1x32xf32>
    %7 = vector.broadcast %6 : vector<1x32xf32> to vector<2x32xf32>
    %8 = arith.addf %4, %7 : vector<2x32xf32>
    %9 = arith.mulf %1, %8 : vector<2x32xf32>
    %cst_8 = arith.constant dense<0.000000e+00> : vector<2xf32>
    %10 = vector.multi_reduction <add>, %9, %cst_8 [1] : vector<2x32xf32> to vector<2xf32>
    %11 = vector.shape_cast %10 : vector<2xf32> to vector<2x1xf32>
    %12 = arith.mulf %8, %8 : vector<2x32xf32>
    %cst_9 = arith.constant dense<0.000000e+00> : vector<2xf32>
    %13 = vector.multi_reduction <add>, %12, %cst_9 [1] : vector<2x32xf32> to vector<2xf32>
    %14 = vector.shape_cast %13 : vector<2xf32> to vector<2x1xf32>
    %15 = tpu.reciprocal %14 : vector<2x1xf32> -> vector<2x1xf32>
    %16 = arith.mulf %11, %15 : vector<2x1xf32>
    %17 = vector.broadcast %16 : vector<2x1xf32> to vector<2x32xf32>
    %18 = arith.mulf %8, %17 : vector<2x32xf32>
    %19 = arith.subf %1, %18 : vector<2x32xf32>
    %c0_10 = arith.constant 0 : index
    %c0_11 = arith.constant 0 : index
    %c0_12 = arith.constant 0 : index
    %20 = vector.load %arg5[%c0_10, %c0_11, %c0_12] : memref<1x2x32xf32, #tpu.memory_space<vmem>>, vector<1x2x32xf32>
    %21 = vector.shape_cast %20 : vector<1x2x32xf32> to vector<2x32xf32>
    %22 = vector.shape_cast %19 : vector<2x32xf32> to vector<1x2x32xf32>
    tpu.vector_store %arg5[%c0_10, %c0_11, %c0_12], %22 {strides = array<i32>} : memref<1x2x32xf32, #tpu.memory_space<vmem>>, vector<1x2x32xf32>,
    return
  }
  func.func @transform_0(%arg0: i32, %arg1: i32) -> (i32, i32, i32) {
    %c0_i32 = arith.constant 0 : i32
    %c0_i32_0 = arith.constant 0 : i32
    return %arg0, %arg1, %c0_i32 : i32, i32, i32
  }
  func.func @transform_1(%arg0: i32, %arg1: i32) -> (i32, i32, i32) {
    %c0_i32 = arith.constant 0 : i32
    %c0_i32_0 = arith.constant 0 : i32
    %c0_i32_1 = arith.constant 0 : i32
    return %arg0, %c0_i32, %c0_i32_0 : i32, i32, i32
  }
  func.func @transform_2(%arg0: i32, %arg1: i32) -> (i32, i32, i32) {
    %c0_i32 = arith.constant 0 : i32
    %c0_i32_0 = arith.constant 0 : i32
    %c0_i32_1 = arith.constant 0 : i32
    return %arg0, %c0_i32, %c0_i32_0 : i32, i32, i32
  }
  func.func @transform_3(%arg0: i32, %arg1: i32) -> (i32, i32, i32) {
    %c0_i32 = arith.constant 0 : i32
    %c0_i32_0 = arith.constant 0 : i32
    return %arg0, %arg1, %c0_i32 : i32, i32, i32
  }
}

</mosaic_0001>

<llo_original>
// kernel: tpu_custom_call.1
$region0: #{tpu_custom_call.1}
  #allocation0 [shape = 'u32[]', space=smem, size = 0x4, offset = 0x4, fixed_abs, tag = 'smem constant byte address 0x4 - core index']
  #allocation1 [shape = 'u32[144,128]{1,0:T(1,128)}', space=vmem, size = 0x12000, scoped, tag = 'internal scratch']
  %s0 = inlined_call_operand.hbm [shape: f32[2,2,32], index: 0, kind: input, shape index: {}]
  %s1 = inlined_call_operand.hbm [shape: f32[2,32,32], index: 1, kind: input, shape index: {}]
  %s2 = inlined_call_operand.vmem [shape: f32[2,1,32], index: 2, kind: input, shape index: {}]
  %s3 = inlined_call_operand.hbm [shape: f32[2,2,32], index: 3, kind: output, shape index: {}]
  %s4 = sld [smem:[#allocation0]]
  $region53: #{tpu_custom_call.1} parent=0
    _
  %s6 = ssub.s32 1, %s4
  %s7 = scalar_select 0, %s6, %s4
  $region1: #{tpu_custom_call.1} parent=0
    #allocation2 [shape = 'u8[2048]{0}', space=vmem, size = 0x800, scoped, tag = 'input window, operand 0']
    #allocation3 [shape = 's32[2]{0}', space=sflag, size = 0x8, scoped, tag = 'scoped memory for tpu_custom_call.1']
    #allocation4 [shape = 's32[2]{0}', space=sflag, size = 0x8, scoped, tag = 'scoped memory for tpu_custom_call.1']
    #allocation5 [shape = 'u8[16384]{0}', space=vmem, size = 0x4000, scoped, tag = 'input window, operand 1, single buffered']
    #allocation6 [shape = 's32[1]{0}', space=sflag, size = 0x4, scoped, tag = 'scoped memory for tpu_custom_call.1']
    #allocation7 [shape = 'u8[2048]{0}', space=vmem, size = 0x800, scoped, tag = 'output window, operand 0']
    %8 = vsyncpa [#allocation3], 0
    %s9 = scalar_lea.sflag [#allocation3], 1
    %10 = vsyncpa %s9, 0
    %11 = vsyncpa [#allocation6], 0
    %12 = vsyncpa [#allocation4], 0
    %s13 = scalar_lea.sflag [#allocation4], 1
    %14 = vsyncpa %s13, 0
    loop: start=0, step=1, limit=4
    $region2: #{tpu_custom_call.1} parent=1 // loop_pre_header
      _
    $region3: #{tpu_custom_call.1} parent=1 // loop_header
      %s16 = sphi 0, %s20
      %p17 = scmp.ge.s32.totalorder %s16, 4
      %s23 = sphi 0, %s35
      %s24 = sphi 0, %s31
      %s25 = sphi 0, %s23
      %s26 = sphi 0, %s24
      %s27 = sphi 0, %s25
      %s28 = sphi 0, %s26
      %s40 = sphi 0, %s42
      %s43 = sphi 0, %s40
      %s44 = sphi 0, %s43
      %s60 = sphi 0, %s44
      %s66 = sphi 0, %s68
      %s69 = sphi 0, %s66
      %s70 = sphi 0, %s69
      %s86 = sphi 0, %s70
      %s92 = sphi 0, %s94
      %s95 = sphi 0, %s92
      %s96 = sphi 0, %s95
      %s112 = sphi 0, %s96
      %s120 = sphi 0, %s122
      %s123 = sphi 0, %s120
      %s124 = sphi 0, %s123
      %s140 = sphi 0, %s124
    $region4: #{tpu_custom_call.1} parent=1 // loop_header_branch
      %19 = sbr.rel (%p17) target = $region8
    $region5: #{tpu_custom_call.1} parent=1 // loop_body
      %s21 = ssub.s32 %s16, 1
      %s22 = ssub.s32 %s16, 2
      %s29 = sadd.s32 1, %s24
      %p30 = scmp.ge.s32.totalorder %s29, 1
      %s31 = scalar_select %p30, 0, %s29
      %s32 = sadd.s32 1, %s23
      %s33 = scalar_select %p30, %s32, %s23
      %p34 = scmp.ge.s32.totalorder %s33, 2
      %s35 = scalar_select %p34, 0, %s33
      %s36 = ssub.s32 %s23, %s35
      %s37 = ssub.s32 %s24, %s31
      %s38 = sor.u32 %s36, %s37
      %p39 = scmp.eq.s32.totalorder %s38, 0
      %s41 = sadd.s32 %s40, 1
      %s42 = scalar_select %p39, %s40, %s41
      %p45 = pneg %p39
      %p46 = scmp.eq.s32.totalorder %s16, 1
      %p47 = por %p45, %p46
      %p48 = scmp.ne.s32.totalorder %s40, %s43
      %p49 = scmp.eq.s32.totalorder %s16, 0
      %p50 = por %p48, %p49
      %p51 = scmp.ne.s32.totalorder %s40, %s43
      %p52 = scmp.eq.s32.totalorder %s21, 1
      %p53 = por %p51, %p52
      %p54 = scmp.ne.s32.totalorder %s43, %s44
      %p55 = scmp.eq.s32.totalorder %s21, 0
      %p56 = por %p54, %p55
      %p57 = scmp.ne.s32.totalorder %s43, %s44
      %p58 = scmp.eq.s32.totalorder %s22, 1
      %p59 = por %p57, %p58
      %p61 = scmp.ne.s32.totalorder %s44, %s60
      %p62 = scmp.eq.s32.totalorder %s22, 0
      %p63 = por %p61, %p62
      %s64 = ssub.s32 %s23, %s35
      %p65 = scmp.eq.s32.totalorder %s64, 0
      %s67 = sadd.s32 %s66, 1
      %s68 = scalar_select %p65, %s66, %s67
      %p71 = pneg %p65
      %p72 = scmp.eq.s32.totalorder %s16, 1
      %p73 = por %p71, %p72
      %p74 = scmp.ne.s32.totalorder %s66, %s69
      %p75 = scmp.eq.s32.totalorder %s16, 0
      %p76 = por %p74, %p75
      %p77 = scmp.ne.s32.totalorder %s66, %s69
      %p78 = scmp.eq.s32.totalorder %s21, 1
      %p79 = por %p77, %p78
      %p80 = scmp.ne.s32.totalorder %s69, %s70
      %p81 = scmp.eq.s32.totalorder %s21, 0
      %p82 = por %p80, %p81
      %p83 = scmp.ne.s32.totalorder %s69, %s70
      %p84 = scmp.eq.s32.totalorder %s22, 1
      %p85 = por %p83, %p84
      %p87 = scmp.ne.s32.totalorder %s70, %s86
      %p88 = scmp.eq.s32.totalorder %s22, 0
      %p89 = por %p87, %p88
      %s90 = ssub.s32 %s23, %s35
      %p91 = scmp.eq.s32.totalorder %s90, 0
      %s93 = sadd.s32 %s92, 1
      %s94 = scalar_select %p91, %s92, %s93
      %p97 = pneg %p91
      %p98 = scmp.eq.s32.totalorder %s16, 1
      %p99 = por %p97, %p98
      %p100 = scmp.ne.s32.totalorder %s92, %s95
      %p101 = scmp.eq.s32.totalorder %s16, 0
      %p102 = por %p100, %p101
      %p103 = scmp.ne.s32.totalorder %s92, %s95
      %p104 = scmp.eq.s32.totalorder %s21, 1
      %p105 = por %p103, %p104
      %p106 = scmp.ne.s32.totalorder %s95, %s96
      %p107 = scmp.eq.s32.totalorder %s21, 0
      %p108 = por %p106, %p107
      %p109 = scmp.ne.s32.totalorder %s95, %s96
      %p110 = scmp.eq.s32.totalorder %s22, 1
      %p111 = por %p109, %p110
      %p113 = scmp.ne.s32.totalorder %s96, %s112
      %p114 = scmp.eq.s32.totalorder %s22, 0
      %p115 = por %p113, %p114
      %s116 = ssub.s32 %s23, %s35
      %s117 = ssub.s32 %s24, %s31
      %s118 = sor.u32 %s116, %s117
      %p119 = scmp.eq.s32.totalorder %s118, 0
      %s121 = sadd.s32 %s120, 1
      %s122 = scalar_select %p119, %s120, %s121
      %p125 = pneg %p119
      %p126 = scmp.eq.s32.totalorder %s16, 1
      %p127 = por %p125, %p126
      %p128 = scmp.ne.s32.totalorder %s120, %s123
      %p129 = scmp.eq.s32.totalorder %s16, 0
      %p130 = por %p128, %p129
      %p131 = scmp.ne.s32.totalorder %s120, %s123
      %p132 = scmp.eq.s32.totalorder %s21, 1
      %p133 = por %p131, %p132
      %p134 = scmp.ne.s32.totalorder %s123, %s124
      %p135 = scmp.eq.s32.totalorder %s21, 0
      %p136 = por %p134, %p135
      %p137 = scmp.ne.s32.totalorder %s123, %s124
      %p138 = scmp.eq.s32.totalorder %s22, 1
      %p139 = por %p137, %p138
      %p141 = scmp.ne.s32.totalorder %s124, %s140
      %p142 = scmp.eq.s32.totalorder %s22, 0
      %p143 = por %p141, %p142
      %p144 = scmp.le.s32.totalorder 1, %s16
      %p145 = scmp.lt.s32.totalorder %s16, 3
      %p146 = pnand %p144, %p145
      %p147 = pneg %p146
      // Predicated region
      $region9: #{tpu_custom_call.1} parent=5 // pred_check
        _
      $region10: #{tpu_custom_call.1} parent=5 // pred_check_branch
        %149 = sbr.rel (%p146) target = $region12
      $region11: #{tpu_custom_call.1} parent=5 // pred_region
        %s150 = ssub.s32 %s16, 1
        // Predicated region
        $region13: #{tpu_custom_call.1} parent=11 // pred_check
          %p151 = pneg %p82
        $region14: #{tpu_custom_call.1} parent=11 // pred_check_branch
          %153 = sbr.rel (%p151) target = $region16
        $region15: #{tpu_custom_call.1} parent=11 // pred_region
          %s155 = ssub.s32 512, 512
          %156 = vsyncadd [#allocation6], %s155
          %s157 = smul.addr %s25, 4
          %s158 = smul.addr %s157, 128
          %s159 = scalar_lea.hbm %s1, %s158
          %s160 = sshll.u32 [#allocation5], 4
          %s161 = int_to_ptr.vmem [resolvable:$true] %s160
          %166 = dma.hbm_to_vmem [thread:$0]  %s159, 512, %s161, [#allocation6], 128, 128, 8
        $region16: #{tpu_custom_call.1} parent=11 // pred_fallthru
          _
        // Predicated region
        $region17: #{tpu_custom_call.1} parent=11 // pred_check
          %p167 = pneg %p108
        $region18: #{tpu_custom_call.1} parent=11 // pred_check_branch
          %169 = sbr.rel (%p167) target = $region20
        $region19: #{tpu_custom_call.1} parent=11 // pred_region
          %p170 = scmp.lt.s32.totalorder %s25, 1
          %s171 = scalar_select %p170, %s25, 1
          %s172 = scalar_lea.vmem %s2, %s171
        $region20: #{tpu_custom_call.1} parent=11 // pred_fallthru
          _
      $region12: #{tpu_custom_call.1} parent=5 // pred_fallthru
        _
      %p173 = scmp.lt.s32.totalorder %s16, 2
      // Predicated region
      $region21: #{tpu_custom_call.1} parent=5 // pred_check
        %p174 = pneg %p173
      $region22: #{tpu_custom_call.1} parent=5 // pred_check_branch
        %176 = sbr.rel (%p174) target = $region24
      $region23: #{tpu_custom_call.1} parent=5 // pred_region
        // Predicated region
        $region25: #{tpu_custom_call.1} parent=23 // pred_check
          %p177 = pneg %p50
        $region26: #{tpu_custom_call.1} parent=23 // pred_check_branch
          %179 = sbr.rel (%p177) target = $region28
        $region27: #{tpu_custom_call.1} parent=23 // pred_region
          %s180 = sand.u32 %s40, 1
          %s181 = scalar_lea.sflag [#allocation3], %s180
          %s182 = sand.u32 %s40, 1
          %s183 = smul.addr %s182, 2
          %s184 = scalar_lea.vmem [#allocation2], %s183
          %s186 = ssub.s32 32, 32
          %187 = vsyncadd %s181, %s186
          %s188 = sadd.s32 %s24, %s23
          %s189 = smul.addr %s188, 32
          %s190 = scalar_lea.hbm %s0, %s189
          %s192 = sshll.u32 %s184, 4
          %s193 = int_to_ptr.vmem [resolvable:$true] %s192
          %195 = dma.hbm_to_vmem [thread:$0]  %s190, 32, %s193, %s181
        $region28: #{tpu_custom_call.1} parent=23 // pred_fallthru
          _
      $region24: #{tpu_custom_call.1} parent=5 // pred_fallthru
        _
      %p196 = scmp.le.s32.totalorder 1, %s16
      %p197 = scmp.lt.s32.totalorder %s16, 3
      %p198 = pnand %p196, %p197
      %p199 = pneg %p198
      // Predicated region
      $region29: #{tpu_custom_call.1} parent=5 // pred_check
        _
      $region30: #{tpu_custom_call.1} parent=5 // pred_check_branch
        %201 = sbr.rel (%p198) target = $region32
      $region31: #{tpu_custom_call.1} parent=5 // pred_region
        %s202 = ssub.s32 %s16, 1
        %s203 = sand.u32 %s43, 1
        %s204 = scalar_lea.sflag [#allocation3], %s203
        %s205 = sand.u32 %s43, 1
        %s206 = smul.addr %s205, 2
        %s207 = scalar_lea.vmem [#allocation2], %s206
        // Predicated region
        $region33: #{tpu_custom_call.1} parent=31 // pred_check
          %p208 = pneg %p56
        $region34: #{tpu_custom_call.1} parent=31 // pred_check_branch
          %210 = sbr.rel (%p208) target = $region36
        $region35: #{tpu_custom_call.1} parent=31 // pred_region
          %211 = dma.done %s204, 32
        $region36: #{tpu_custom_call.1} parent=31 // pred_fallthru
          _
        // Predicated region
        $region37: #{tpu_custom_call.1} parent=31 // pred_check
          %p212 = pneg %p82
        $region38: #{tpu_custom_call.1} parent=31 // pred_check_branch
          %214 = sbr.rel (%p212) target = $region40
        $region39: #{tpu_custom_call.1} parent=31 // pred_region
          %215 = dma.done [#allocation6], 512
        $region40: #{tpu_custom_call.1} parent=31 // pred_fallthru
          _
        %s216 = sand.u32 %s43, 1
        %s217 = scalar_lea.sflag [#allocation3], %s216
        %s218 = sand.u32 %s43, 1
        %s219 = smul.addr %s218, 2
        %s220 = scalar_lea.vmem [#allocation2], %s219
        %p221 = pneg %p56
        %p222 = pneg %p53
        %p223 = pneg %p82
        %p224 = pneg %p79
        %p225 = scmp.lt.s32.totalorder %s25, 1
        %s226 = scalar_select %p225, %s25, 1
        %s227 = scalar_lea.vmem %s2, %s226
        %p228 = pneg %p108
        %p229 = pneg %p105
        %p230 = pneg %p136
        %p231 = pneg %p133
        %s232 = sand.u32 %s123, 1
        %s233 = scalar_lea.sflag [#allocation4], %s232
        %s234 = sand.u32 %s123, 1
        %s235 = smul.addr %s234, 2
        %s236 = scalar_lea.vmem [#allocation7], %s235
        %p237 = scmp.lt.s32.totalorder %s25, 1
        %s238 = scalar_select %p237, %s25, 1
        %s239 = scalar_lea.vmem %s2, %s238
        %v240 = vld [vmem:[%s207] sm:$0x3]
        %v241 = vld [vmem:[#allocation5] sm:$0xff]
        %v242 = vld [vmem:[#allocation5 + $0x8] sm:$0xff]
        %v243 = vld [vmem:[#allocation5 + $0x10] sm:$0xff]
        %v244 = vld [vmem:[#allocation5 + $0x18] sm:$0xff]
        %v245 = vld [vmem:[%s239] sm:$0x1]
        %v247 = vlaneseq
        %v248 = vshrl.u32 %v247, 7
        %v249 = vsub.s32 0, %v248
        %v250 = vrot.slane %v245, %v249
        %vm252 = vcmask 261120
        %v254 = vsel %vm252, %v240, 0
        %256 = vmatprep.subr.mxu0 0.0
        %257 = vmatpush1.msra.mxu0 0.0
        %258 = vmatprep.subr.mxu0 0.0
        %259 = vmatpush1.msra.mxu0 0.0
        %260 = vmatprep.subr.mxu0 0.0
        %261 = vmatpush1.msra.mxu0 0.0
        %262 = vmatprep.subr.mxu0 0.0
        %263 = vmatpush1.msra.mxu0 0.0
        %264 = vmatprep.subr.mxu0 0.0
        %265 = vmatpush1.msra.mxu0 0.0
        %266 = vmatprep.subr.mxu0 0.0
        %267 = vmatpush1.msra.mxu0 0.0
        %268 = vmatprep.subr.mxu0 0.0
        %269 = vmatpush1.msra.mxu0 0.0
        %270 = vmatprep.subr.mxu0 0.0
        %271 = vmatpush1.msra.mxu0 0.0
        %272 = vmatprep.subr.mxu0 0.0
        %273 = vmatpush1.msra.mxu0 0.0
        %274 = vmatprep.subr.mxu0 0.0
        %275 = vmatpush1.msra.mxu0 0.0
        %276 = vmatprep.subr.mxu0 0.0
        %277 = vmatpush1.msra.mxu0 0.0
        %278 = vmatprep.subr.mxu0 0.0
        %279 = vmatpush1.msra.mxu0 0.0
        %280 = vmatprep.subr.mxu0 0.0
        %281 = vmatpush1.msra.mxu0 %v244
        %282 = vmatprep.subr.mxu0 0.0
        %283 = vmatpush1.msra.mxu0 %v243
        %284 = vmatprep.subr.mxu0 0.0
        %285 = vmatpush1.msra.mxu0 %v242
        %286 = vmatprep.subr.mxu0 0.0
        %287 = vmatpush1.msra.mxu0 %v241
        %288 = vmatprep.subr.mxu0 0.0
        %289 = vmatpush2.msra.mxu0 0.0
        %290 = vmatprep.subr.mxu0 0.0
        %291 = vmatpush2.msra.mxu0 0.0
        %292 = vmatprep.subr.mxu0 0.0
        %293 = vmatpush2.msra.mxu0 0.0
        %294 = vmatprep.subr.mxu0 0.0
        %295 = vmatpush2.msra.mxu0 0.0
        %296 = vmatprep.subr.mxu0 0.0
        %297 = vmatpush2.msra.mxu0 0.0
        %298 = vmatprep.subr.mxu0 0.0
        %299 = vmatpush2.msra.mxu0 0.0
        %300 = vmatprep.subr.mxu0 0.0
        %301 = vmatpush2.msra.mxu0 0.0
        %302 = vmatprep.subr.mxu0 0.0
        %303 = vmatpush2.msra.mxu0 0.0
        %304 = vmatprep.subr.mxu0 0.0
        %305 = vmatpush2.msra.mxu0 0.0
        %306 = vmatprep.subr.mxu0 0.0
        %307 = vmatpush2.msra.mxu0 0.0
        %308 = vmatprep.subr.mxu0 0.0
        %309 = vmatpush2.msra.mxu0 0.0
        %310 = vmatprep.subr.mxu0 0.0
        %311 = vmatpush2.msra.mxu0 0.0
        %312 = vmatprep.subr.mxu0 0.0
        %313 = vmatpush2.msra.mxu0 0.0
        %314 = vmatprep.subr.mxu0 0.0
        %315 = vmatpush2.msra.mxu0 0.0
        %316 = vmatprep.subr.mxu0 0.0
        %317 = vmatpush2.msra.mxu0 0.0
        %318 = vmatprep.subr.mxu0 0.0
        %319 = vmatpush2.msra.mxu0 0.0
        %320 = vmatprep.mubr.f32.mxu0 0.0
        %321 = vmatmul.mubr.f32.gmra.mxu0 %v254
        %v322 = vpop.f32.mrf.mxu0
        %v323 = vadd.f32 %v250, %v322
        %v324 = vpop.f32.mrf.mxu0
        %325 = vdwg.mxu0
        %v326 = vmul.f32 %v240, %v323
        %vm327 = vcmask 254976
        %v328 = vsel %vm327, %v326, 0.0
        %329 = vadd.xlane.f32.xlu0 %v328
        %v330 = vpop.xlane.xlu0 %329
        %v331 = vmul.f32 %v323, %v323
        %v332 = vsel %vm327, %v331, 0.0
        %333 = vadd.xlane.f32.xlu0 %v332
        %v334 = vpop.xlane.xlu0 %333
        %v335 = vrcp.pop %v334
        %v336 = vmul.f32 %v330, %v335
        %v337 = vmul.f32 %v323, %v336
        %v338 = vsub.f32 %v240, %v337
        %339 = vst.msk [vmem:[%s236] sm:$0x3] %vm327, %v338
        %s340 = sand.u32 %s123, 1
        %s341 = scalar_lea.sflag [#allocation4], %s340
        %s342 = sand.u32 %s123, 1
        %s343 = smul.addr %s342, 2
        %s344 = scalar_lea.vmem [#allocation7], %s343
        // Predicated region
        $region41: #{tpu_custom_call.1} parent=31 // pred_check
          %p345 = pneg %p133
        $region42: #{tpu_custom_call.1} parent=31 // pred_check_branch
          %347 = sbr.rel (%p345) target = $region44
        $region43: #{tpu_custom_call.1} parent=31 // pred_region
          %s349 = ssub.s32 32, 32
          %350 = vsyncadd %s341, %s349
          %s351 = sadd.s32 %s26, %s25
          %s352 = smul.addr %s351, 32
          %s353 = scalar_lea.hbm %s3, %s352
          %s355 = sshll.u32 %s344, 4
          %s356 = int_to_ptr.vmem [resolvable:$true] %s355
          %358 = dma.vmem_to_hbm [thread:$0]  %s356, 32, %s353, %s341
        $region44: #{tpu_custom_call.1} parent=31 // pred_fallthru
          _
      $region32: #{tpu_custom_call.1} parent=5 // pred_fallthru
        _
      %p359 = scmp.le.s32.totalorder 2, %s16
      // Predicated region
      $region45: #{tpu_custom_call.1} parent=5 // pred_check
        %p360 = pneg %p359
      $region46: #{tpu_custom_call.1} parent=5 // pred_check_branch
        %362 = sbr.rel (%p360) target = $region48
      $region47: #{tpu_custom_call.1} parent=5 // pred_region
        %s363 = ssub.s32 %s16, 2
        // Predicated region
        $region49: #{tpu_custom_call.1} parent=47 // pred_check
          %p364 = pneg %p139
        $region50: #{tpu_custom_call.1} parent=47 // pred_check_branch
          %366 = sbr.rel (%p364) target = $region52
        $region51: #{tpu_custom_call.1} parent=47 // pred_region
          %s367 = sand.u32 %s124, 1
          %s368 = scalar_lea.sflag [#allocation4], %s367
          %s369 = sand.u32 %s124, 1
          %s370 = smul.addr %s369, 2
          %s371 = scalar_lea.vmem [#allocation7], %s370
          %372 = dma.done %s368, 32
        $region52: #{tpu_custom_call.1} parent=47 // pred_fallthru
          _
      $region48: #{tpu_custom_call.1} parent=5 // pred_fallthru
        _
    $region6: #{tpu_custom_call.1} parent=1 // loop_footer
      %s20 = sadd.s32 1, %s16
    $region7: #{tpu_custom_call.1} parent=1 // loop_footer_branch
      %15 = sbr.rel target = $region3
    $region8: #{tpu_custom_call.1} parent=1 // loop_exit
      _
    %373 = vsyncpa [#allocation3], 1
    %s374 = scalar_lea.sflag [#allocation3], 1
    %375 = vsyncpa %s374, 1
    %376 = vsyncpa [#allocation6], 1
    %377 = vsyncpa [#allocation4], 1
    %s378 = scalar_lea.sflag [#allocation4], 1
    %379 = vsyncpa %s378, 1

// kernel: tpu_custom_call.1
$region0: #{tpu_custom_call.1}
  #allocation0 [shape = 'u32[]', space=smem, size = 0x4, offset = 0x4, fixed_abs, tag = 'smem constant byte address 0x4 - core index']
  #allocation1 [shape = 'u32[144,128]{1,0:T(1,128)}', space=vmem, size = 0x12000, scoped, tag = 'internal scratch']
  %s0 = inlined_call_operand.hbm [shape: f32[2,2,32], index: 0, kind: input, shape index: {}]
  %s1 = inlined_call_operand.hbm [shape: f32[2,32,32], index: 1, kind: input, shape index: {}]
  %s2 = inlined_call_operand.vmem [shape: f32[2,1,32], index: 2, kind: input, shape index: {}]
  %s3 = inlined_call_operand.hbm [shape: f32[2,2,32], index: 3, kind: output, shape index: {}]
  %s4 = sld [smem:[#allocation0]]
  $region53: #{tpu_custom_call.1} parent=0
    _
  %s6 = ssub.s32 1, %s4
  %s7 = scalar_select 0, %s6, %s4
  $region1: #{tpu_custom_call.1} parent=0
    #allocation2 [shape = 'u8[2048]{0}', space=vmem, size = 0x800, scoped, tag = 'input window, operand 0']
    #allocation3 [shape = 's32[2]{0}', space=sflag, size = 0x8, scoped, tag = 'scoped memory for tpu_custom_call.1']
    #allocation4 [shape = 's32[2]{0}', space=sflag, size = 0x8, scoped, tag = 'scoped memory for tpu_custom_call.1']
    #allocation5 [shape = 'u8[32768]{0}', space=vmem, size = 0x8000, scoped, tag = 'input window, operand 1']
    #allocation6 [shape = 's32[2]{0}', space=sflag, size = 0x8, scoped, tag = 'scoped memory for tpu_custom_call.1']
    #allocation7 [shape = 'u8[2048]{0}', space=vmem, size = 0x800, scoped, tag = 'output window, operand 0']
    %8 = vsyncpa [#allocation3], 0
    %s9 = scalar_lea.sflag [#allocation3], 1
    %10 = vsyncpa %s9, 0
    %11 = vsyncpa [#allocation6], 0
    %s12 = scalar_lea.sflag [#allocation6], 1
    %13 = vsyncpa %s12, 0
    %14 = vsyncpa [#allocation4], 0
    %s15 = scalar_lea.sflag [#allocation4], 1
    %16 = vsyncpa %s15, 0
    loop: start=0, step=1, limit=4
    $region2: #{tpu_custom_call.1} parent=1 // loop_pre_header
      _
    $region3: #{tpu_custom_call.1} parent=1 // loop_header
      %s18 = sphi 0, %s22
      %p19 = scmp.ge.s32.totalorder %s18, 4
      %s25 = sphi 0, %s37
      %s26 = sphi 0, %s33
      %s27 = sphi 0, %s25
      %s28 = sphi 0, %s26
      %s29 = sphi 0, %s27
      %s30 = sphi 0, %s28
      %s42 = sphi 0, %s44
      %s45 = sphi 0, %s42
      %s46 = sphi 0, %s45
      %s62 = sphi 0, %s46
      %s68 = sphi 0, %s70
      %s71 = sphi 0, %s68
      %s72 = sphi 0, %s71
      %s88 = sphi 0, %s72
      %s94 = sphi 0, %s96
      %s97 = sphi 0, %s94
      %s98 = sphi 0, %s97
      %s114 = sphi 0, %s98
      %s122 = sphi 0, %s124
      %s125 = sphi 0, %s122
      %s126 = sphi 0, %s125
      %s142 = sphi 0, %s126
    $region4: #{tpu_custom_call.1} parent=1 // loop_header_branch
      %21 = sbr.rel (%p19) target = $region8
    $region5: #{tpu_custom_call.1} parent=1 // loop_body
      %s23 = ssub.s32 %s18, 1
      %s24 = ssub.s32 %s18, 2
      %s31 = sadd.s32 1, %s26
      %p32 = scmp.ge.s32.totalorder %s31, 1
      %s33 = scalar_select %p32, 0, %s31
      %s34 = sadd.s32 1, %s25
      %s35 = scalar_select %p32, %s34, %s25
      %p36 = scmp.ge.s32.totalorder %s35, 2
      %s37 = scalar_select %p36, 0, %s35
      %s38 = ssub.s32 %s25, %s37
      %s39 = ssub.s32 %s26, %s33
      %s40 = sor.u32 %s38, %s39
      %p41 = scmp.eq.s32.totalorder %s40, 0
      %s43 = sadd.s32 %s42, 1
      %s44 = scalar_select %p41, %s42, %s43
      %p47 = pneg %p41
      %p48 = scmp.eq.s32.totalorder %s18, 1
      %p49 = por %p47, %p48
      %p50 = scmp.ne.s32.totalorder %s42, %s45
      %p51 = scmp.eq.s32.totalorder %s18, 0
      %p52 = por %p50, %p51
      %p53 = scmp.ne.s32.totalorder %s42, %s45
      %p54 = scmp.eq.s32.totalorder %s23, 1
      %p55 = por %p53, %p54
      %p56 = scmp.ne.s32.totalorder %s45, %s46
      %p57 = scmp.eq.s32.totalorder %s23, 0
      %p58 = por %p56, %p57
      %p59 = scmp.ne.s32.totalorder %s45, %s46
      %p60 = scmp.eq.s32.totalorder %s24, 1
      %p61 = por %p59, %p60
      %p63 = scmp.ne.s32.totalorder %s46, %s62
      %p64 = scmp.eq.s32.totalorder %s24, 0
      %p65 = por %p63, %p64
      %s66 = ssub.s32 %s25, %s37
      %p67 = scmp.eq.s32.totalorder %s66, 0
      %s69 = sadd.s32 %s68, 1
      %s70 = scalar_select %p67, %s68, %s69
      %p73 = pneg %p67
      %p74 = scmp.eq.s32.totalorder %s18, 1
      %p75 = por %p73, %p74
      %p76 = scmp.ne.s32.totalorder %s68, %s71
      %p77 = scmp.eq.s32.totalorder %s18, 0
      %p78 = por %p76, %p77
      %p79 = scmp.ne.s32.totalorder %s68, %s71
      %p80 = scmp.eq.s32.totalorder %s23, 1
      %p81 = por %p79, %p80
      %p82 = scmp.ne.s32.totalorder %s71, %s72
      %p83 = scmp.eq.s32.totalorder %s23, 0
      %p84 = por %p82, %p83
      %p85 = scmp.ne.s32.totalorder %s71, %s72
      %p86 = scmp.eq.s32.totalorder %s24, 1
      %p87 = por %p85, %p86
      %p89 = scmp.ne.s32.totalorder %s72, %s88
      %p90 = scmp.eq.s32.totalorder %s24, 0
      %p91 = por %p89, %p90
      %s92 = ssub.s32 %s25, %s37
      %p93 = scmp.eq.s32.totalorder %s92, 0
      %s95 = sadd.s32 %s94, 1
      %s96 = scalar_select %p93, %s94, %s95
      %p99 = pneg %p93
      %p100 = scmp.eq.s32.totalorder %s18, 1
      %p101 = por %p99, %p100
      %p102 = scmp.ne.s32.totalorder %s94, %s97
      %p103 = scmp.eq.s32.totalorder %s18, 0
      %p104 = por %p102, %p103
      %p105 = scmp.ne.s32.totalorder %s94, %s97
      %p106 = scmp.eq.s32.totalorder %s23, 1
      %p107 = por %p105, %p106
      %p108 = scmp.ne.s32.totalorder %s97, %s98
      %p109 = scmp.eq.s32.totalorder %s23, 0
      %p110 = por %p108, %p109
      %p111 = scmp.ne.s32.totalorder %s97, %s98
      %p112 = scmp.eq.s32.totalorder %s24, 1
      %p113 = por %p111, %p112
      %p115 = scmp.ne.s32.totalorder %s98, %s114
      %p116 = scmp.eq.s32.totalorder %s24, 0
      %p117 = por %p115, %p116
      %s118 = ssub.s32 %s25, %s37
      %s119 = ssub.s32 %s26, %s33
      %s120 = sor.u32 %s118, %s119
      %p121 = scmp.eq.s32.totalorder %s120, 0
      %s123 = sadd.s32 %s122, 1
      %s124 = scalar_select %p121, %s122, %s123
      %p127 = pneg %p121
      %p128 = scmp.eq.s32.totalorder %s18, 1
      %p129 = por %p127, %p128
      %p130 = scmp.ne.s32.totalorder %s122, %s125
      %p131 = scmp.eq.s32.totalorder %s18, 0
      %p132 = por %p130, %p131
      %p133 = scmp.ne.s32.totalorder %s122, %s125
      %p134 = scmp.eq.s32.totalorder %s23, 1
      %p135 = por %p133, %p134
      %p136 = scmp.ne.s32.totalorder %s125, %s126
      %p137 = scmp.eq.s32.totalorder %s23, 0
      %p138 = por %p136, %p137
      %p139 = scmp.ne.s32.totalorder %s125, %s126
      %p140 = scmp.eq.s32.totalorder %s24, 1
      %p141 = por %p139, %p140
      %p143 = scmp.ne.s32.totalorder %s126, %s142
      %p144 = scmp.eq.s32.totalorder %s24, 0
      %p145 = por %p143, %p144
      %p146 = scmp.le.s32.totalorder 1, %s18
      %p147 = scmp.lt.s32.totalorder %s18, 3
      %p148 = pnand %p146, %p147
      %p149 = pneg %p148
      // Predicated region
      $region9: #{tpu_custom_call.1} parent=5 // pred_check
        _
      $region10: #{tpu_custom_call.1} parent=5 // pred_check_branch
        %151 = sbr.rel (%p148) target = $region12
      $region11: #{tpu_custom_call.1} parent=5 // pred_region
        %s152 = ssub.s32 %s18, 1
      $region12: #{tpu_custom_call.1} parent=5 // pred_fallthru
        _
      %p153 = scmp.lt.s32.totalorder %s18, 2
      // Predicated region
      $region13: #{tpu_custom_call.1} parent=5 // pred_check
        %p154 = pneg %p153
      $region14: #{tpu_custom_call.1} parent=5 // pred_check_branch
        %156 = sbr.rel (%p154) target = $region16
      $region15: #{tpu_custom_call.1} parent=5 // pred_region
        // Predicated region
        $region17: #{tpu_custom_call.1} parent=15 // pred_check
          %p157 = pneg %p52
        $region18: #{tpu_custom_call.1} parent=15 // pred_check_branch
          %159 = sbr.rel (%p157) target = $region20
        $region19: #{tpu_custom_call.1} parent=15 // pred_region
          %s160 = sand.u32 %s42, 1
          %s161 = scalar_lea.sflag [#allocation3], %s160
          %s162 = sand.u32 %s42, 1
          %s163 = smul.addr %s162, 2
          %s164 = scalar_lea.vmem [#allocation2], %s163
          %s166 = ssub.s32 32, 32
          %167 = vsyncadd %s161, %s166
          %s168 = sadd.s32 %s26, %s25
          %s169 = smul.addr %s168, 32
          %s170 = scalar_lea.hbm %s0, %s169
          %s172 = sshll.u32 %s164, 4
          %s173 = int_to_ptr.vmem [resolvable:$true] %s172
          %175 = dma.hbm_to_vmem [thread:$0]  %s170, 32, %s173, %s161
        $region20: #{tpu_custom_call.1} parent=15 // pred_fallthru
          _
        // Predicated region
        $region21: #{tpu_custom_call.1} parent=15 // pred_check
          %p176 = pneg %p78
        $region22: #{tpu_custom_call.1} parent=15 // pred_check_branch
          %178 = sbr.rel (%p176) target = $region24
        $region23: #{tpu_custom_call.1} parent=15 // pred_region
          %s179 = sand.u32 %s68, 1
          %s180 = scalar_lea.sflag [#allocation6], %s179
          %s181 = sand.u32 %s68, 1
          %s182 = smul.addr %s181, 32
          %s183 = scalar_lea.vmem [#allocation5], %s182
          %s185 = ssub.s32 512, 512
          %186 = vsyncadd %s180, %s185
          %s187 = smul.addr %s25, 4
          %s188 = smul.addr %s187, 128
          %s189 = scalar_lea.hbm %s1, %s188
          %s190 = sshll.u32 %s183, 4
          %s191 = int_to_ptr.vmem [resolvable:$true] %s190
          %196 = dma.hbm_to_vmem [thread:$0]  %s189, 512, %s191, %s180, 128, 128, 8
        $region24: #{tpu_custom_call.1} parent=15 // pred_fallthru
          _
        // Predicated region
        $region25: #{tpu_custom_call.1} parent=15 // pred_check
          %p197 = pneg %p104
        $region26: #{tpu_custom_call.1} parent=15 // pred_check_branch
          %199 = sbr.rel (%p197) target = $region28
        $region27: #{tpu_custom_call.1} parent=15 // pred_region
          %p200 = scmp.lt.s32.totalorder %s25, 1
          %s201 = scalar_select %p200, %s25, 1
          %s202 = scalar_lea.vmem %s2, %s201
        $region28: #{tpu_custom_call.1} parent=15 // pred_fallthru
          _
      $region16: #{tpu_custom_call.1} parent=5 // pred_fallthru
        _
      %p203 = scmp.le.s32.totalorder 1, %s18
      %p204 = scmp.lt.s32.totalorder %s18, 3
      %p205 = pnand %p203, %p204
      %p206 = pneg %p205
      // Predicated region
      $region29: #{tpu_custom_call.1} parent=5 // pred_check
        _
      $region30: #{tpu_custom_call.1} parent=5 // pred_check_branch
        %208 = sbr.rel (%p205) target = $region32
      $region31: #{tpu_custom_call.1} parent=5 // pred_region
        %s209 = ssub.s32 %s18, 1
        %s210 = sand.u32 %s45, 1
        %s211 = scalar_lea.sflag [#allocation3], %s210
        %s212 = sand.u32 %s45, 1
        %s213 = smul.addr %s212, 2
        %s214 = scalar_lea.vmem [#allocation2], %s213
        // Predicated region
        $region33: #{tpu_custom_call.1} parent=31 // pred_check
          %p215 = pneg %p58
        $region34: #{tpu_custom_call.1} parent=31 // pred_check_branch
          %217 = sbr.rel (%p215) target = $region36
        $region35: #{tpu_custom_call.1} parent=31 // pred_region
          %218 = dma.done %s211, 32
        $region36: #{tpu_custom_call.1} parent=31 // pred_fallthru
          _
        %s219 = sand.u32 %s71, 1
        %s220 = scalar_lea.sflag [#allocation6], %s219
        %s221 = sand.u32 %s71, 1
        %s222 = smul.addr %s221, 32
        %s223 = scalar_lea.vmem [#allocation5], %s222
        // Predicated region
        $region37: #{tpu_custom_call.1} parent=31 // pred_check
          %p224 = pneg %p84
        $region38: #{tpu_custom_call.1} parent=31 // pred_check_branch
          %226 = sbr.rel (%p224) target = $region40
        $region39: #{tpu_custom_call.1} parent=31 // pred_region
          %227 = dma.done %s220, 512
        $region40: #{tpu_custom_call.1} parent=31 // pred_fallthru
          _
        %s228 = sand.u32 %s45, 1
        %s229 = scalar_lea.sflag [#allocation3], %s228
        %s230 = sand.u32 %s45, 1
        %s231 = smul.addr %s230, 2
        %s232 = scalar_lea.vmem [#allocation2], %s231
        %p233 = pneg %p58
        %p234 = pneg %p55
        %s235 = sand.u32 %s71, 1
        %s236 = scalar_lea.sflag [#allocation6], %s235
        %s237 = sand.u32 %s71, 1
        %s238 = smul.addr %s237, 32
        %s239 = scalar_lea.vmem [#allocation5], %s238
        %p240 = pneg %p84
        %p241 = pneg %p81
        %p242 = scmp.lt.s32.totalorder %s27, 1
        %s243 = scalar_select %p242, %s27, 1
        %s244 = scalar_lea.vmem %s2, %s243
        %p245 = pneg %p110
        %p246 = pneg %p107
        %p247 = pneg %p138
        %p248 = pneg %p135
        %s249 = sand.u32 %s125, 1
        %s250 = scalar_lea.sflag [#allocation4], %s249
        %s251 = sand.u32 %s125, 1
        %s252 = smul.addr %s251, 2
        %s253 = scalar_lea.vmem [#allocation7], %s252
        %p254 = scmp.lt.s32.totalorder %s27, 1
        %s255 = scalar_select %p254, %s27, 1
        %s256 = scalar_lea.vmem %s2, %s255
        %v257 = vld [vmem:[%s214] sm:$0x3]
        %v258 = vld [vmem:[%s223] sm:$0xff]
        %v259 = vld [vmem:[%s223 + $0x8] sm:$0xff]
        %v260 = vld [vmem:[%s223 + $0x10] sm:$0xff]
        %v261 = vld [vmem:[%s223 + $0x18] sm:$0xff]
        %v262 = vld [vmem:[%s256] sm:$0x1]
        %v264 = vlaneseq
        %v265 = vshrl.u32 %v264, 7
        %v266 = vsub.s32 0, %v265
        %v267 = vrot.slane %v262, %v266
        %vm269 = vcmask 261120
        %v271 = vsel %vm269, %v257, 0
        %273 = vmatprep.subr.mxu0 0.0
        %274 = vmatpush1.msra.mxu0 0.0
        %275 = vmatprep.subr.mxu0 0.0
        %276 = vmatpush1.msra.mxu0 0.0
        %277 = vmatprep.subr.mxu0 0.0
        %278 = vmatpush1.msra.mxu0 0.0
        %279 = vmatprep.subr.mxu0 0.0
        %280 = vmatpush1.msra.mxu0 0.0
        %281 = vmatprep.subr.mxu0 0.0
        %282 = vmatpush1.msra.mxu0 0.0
        %283 = vmatprep.subr.mxu0 0.0
        %284 = vmatpush1.msra.mxu0 0.0
        %285 = vmatprep.subr.mxu0 0.0
        %286 = vmatpush1.msra.mxu0 0.0
        %287 = vmatprep.subr.mxu0 0.0
        %288 = vmatpush1.msra.mxu0 0.0
        %289 = vmatprep.subr.mxu0 0.0
        %290 = vmatpush1.msra.mxu0 0.0
        %291 = vmatprep.subr.mxu0 0.0
        %292 = vmatpush1.msra.mxu0 0.0
        %293 = vmatprep.subr.mxu0 0.0
        %294 = vmatpush1.msra.mxu0 0.0
        %295 = vmatprep.subr.mxu0 0.0
        %296 = vmatpush1.msra.mxu0 0.0
        %297 = vmatprep.subr.mxu0 0.0
        %298 = vmatpush1.msra.mxu0 %v261
        %299 = vmatprep.subr.mxu0 0.0
        %300 = vmatpush1.msra.mxu0 %v260
        %301 = vmatprep.subr.mxu0 0.0
        %302 = vmatpush1.msra.mxu0 %v259
        %303 = vmatprep.subr.mxu0 0.0
        %304 = vmatpush1.msra.mxu0 %v258
        %305 = vmatprep.subr.mxu0 0.0
        %306 = vmatpush2.msra.mxu0 0.0
        %307 = vmatprep.subr.mxu0 0.0
        %308 = vmatpush2.msra.mxu0 0.0
        %309 = vmatprep.subr.mxu0 0.0
        %310 = vmatpush2.msra.mxu0 0.0
        %311 = vmatprep.subr.mxu0 0.0
        %312 = vmatpush2.msra.mxu0 0.0
        %313 = vmatprep.subr.mxu0 0.0
        %314 = vmatpush2.msra.mxu0 0.0
        %315 = vmatprep.subr.mxu0 0.0
        %316 = vmatpush2.msra.mxu0 0.0
        %317 = vmatprep.subr.mxu0 0.0
        %318 = vmatpush2.msra.mxu0 0.0
        %319 = vmatprep.subr.mxu0 0.0
        %320 = vmatpush2.msra.mxu0 0.0
        %321 = vmatprep.subr.mxu0 0.0
        %322 = vmatpush2.msra.mxu0 0.0
        %323 = vmatprep.subr.mxu0 0.0
        %324 = vmatpush2.msra.mxu0 0.0
        %325 = vmatprep.subr.mxu0 0.0
        %326 = vmatpush2.msra.mxu0 0.0
        %327 = vmatprep.subr.mxu0 0.0
        %328 = vmatpush2.msra.mxu0 0.0
        %329 = vmatprep.subr.mxu0 0.0
        %330 = vmatpush2.msra.mxu0 0.0
        %331 = vmatprep.subr.mxu0 0.0
        %332 = vmatpush2.msra.mxu0 0.0
        %333 = vmatprep.subr.mxu0 0.0
        %334 = vmatpush2.msra.mxu0 0.0
        %335 = vmatprep.subr.mxu0 0.0
        %336 = vmatpush2.msra.mxu0 0.0
        %337 = vmatprep.mubr.f32.mxu0 0.0
        %338 = vmatmul.mubr.f32.gmra.mxu0 %v271
        %v339 = vpop.f32.mrf.mxu0
        %v340 = vadd.f32 %v267, %v339
        %v341 = vpop.f32.mrf.mxu0
        %342 = vdwg.mxu0
        %v343 = vmul.f32 %v257, %v340
        %vm344 = vcmask 254976
        %v345 = vsel %vm344, %v343, 0.0
        %346 = vadd.xlane.f32.xlu0 %v345
        %v347 = vpop.xlane.xlu0 %346
        %v348 = vmul.f32 %v340, %v340
        %v349 = vsel %vm344, %v348, 0.0
        %350 = vadd.xlane.f32.xlu0 %v349
        %v351 = vpop.xlane.xlu0 %350
        %v352 = vrcp.pop %v351
        %v353 = vmul.f32 %v347, %v352
        %v354 = vmul.f32 %v340, %v353
        %v355 = vsub.f32 %v257, %v354
        %356 = vst.msk [vmem:[%s253] sm:$0x3] %vm344, %v355
        %s357 = sand.u32 %s125, 1
        %s358 = scalar_lea.sflag [#allocation4], %s357
        %s359 = sand.u32 %s125, 1
        %s360 = smul.addr %s359, 2
        %s361 = scalar_lea.vmem [#allocation7], %s360
        // Predicated region
        $region41: #{tpu_custom_call.1} parent=31 // pred_check
          %p362 = pneg %p135
        $region42: #{tpu_custom_call.1} parent=31 // pred_check_branch
          %364 = sbr.rel (%p362) target = $region44
        $region43: #{tpu_custom_call.1} parent=31 // pred_region
          %s366 = ssub.s32 32, 32
          %367 = vsyncadd %s358, %s366
          %s368 = sadd.s32 %s28, %s27
          %s369 = smul.addr %s368, 32
          %s370 = scalar_lea.hbm %s3, %s369
          %s372 = sshll.u32 %s361, 4
          %s373 = int_to_ptr.vmem [resolvable:$true] %s372
          %375 = dma.vmem_to_hbm [thread:$0]  %s373, 32, %s370, %s358
        $region44: #{tpu_custom_call.1} parent=31 // pred_fallthru
          _
      $region32: #{tpu_custom_call.1} parent=5 // pred_fallthru
        _
      %p376 = scmp.le.s32.totalorder 2, %s18
      // Predicated region
      $region45: #{tpu_custom_call.1} parent=5 // pred_check
        %p377 = pneg %p376
      $region46: #{tpu_custom_call.1} parent=5 // pred_check_branch
        %379 = sbr.rel (%p377) target = $region48
      $region47: #{tpu_custom_call.1} parent=5 // pred_region
        %s380 = ssub.s32 %s18, 2
        // Predicated region
        $region49: #{tpu_custom_call.1} parent=47 // pred_check
          %p381 = pneg %p141
        $region50: #{tpu_custom_call.1} parent=47 // pred_check_branch
          %383 = sbr.rel (%p381) target = $region52
        $region51: #{tpu_custom_call.1} parent=47 // pred_region
          %s384 = sand.u32 %s126, 1
          %s385 = scalar_lea.sflag [#allocation4], %s384
          %s386 = sand.u32 %s126, 1
          %s387 = smul.addr %s386, 2
          %s388 = scalar_lea.vmem [#allocation7], %s387
          %389 = dma.done %s385, 32
        $region52: #{tpu_custom_call.1} parent=47 // pred_fallthru
          _
      $region48: #{tpu_custom_call.1} parent=5 // pred_fallthru
        _
    $region6: #{tpu_custom_call.1} parent=1 // loop_footer
      %s22 = sadd.s32 1, %s18
    $region7: #{tpu_custom_call.1} parent=1 // loop_footer_branch
      %17 = sbr.rel target = $region3
    $region8: #{tpu_custom_call.1} parent=1 // loop_exit
      _
    %390 = vsyncpa [#allocation3], 1
    %s391 = scalar_lea.sflag [#allocation3], 1
    %392 = vsyncpa %s391, 1
    %393 = vsyncpa [#allocation6], 1
    %s394 = scalar_lea.sflag [#allocation6], 1
    %395 = vsyncpa %s394, 1
    %396 = vsyncpa [#allocation4], 1
    %s397 = scalar_lea.sflag [#allocation4], 1
    %398 = vsyncpa %s397, 1

</llo_original>
